<compile_context>
chip_gen: v5e
topology: v5e:2x2
jax: 0.10.0
libtpu: 0.0.40
codegen_flags: <defaults>
</compile_context>

<pallas_src>
import functools
import math

import jax
import jax.numpy as jnp
from jax.experimental import pallas as pl
from jax.experimental.pallas import tpu as pltpu


_MAX_BLOCK_BYTES = 2 * 1024 * 1024  # per-buffer cap; ~8 MiB with in+out double-buffered


def _agent_frame_kernel(pose_ref, vec_ref, out_ref, *, feature_dim):
    """One (TB, TN) block of the flattened [B, C*L*F] tensor.

    pose_ref: VMEM (TB, 4)  float32 -> (x, y, cos(h), sin(h)) per batch row
    vec_ref : VMEM (TB, TN)         -> contiguous (C, L, F) flattened on lanes
    out_ref : VMEM (TB, TN)
    """
    v = vec_ref[...].astype(jnp.float32)           # (TB, TN)
    x0 = pose_ref[:, 0:1]                          # (TB, 1) -> lane broadcast
    y0 = pose_ref[:, 1:2]
    c = pose_ref[:, 2:3]
    s = pose_ref[:, 3:4]

    n_lanes = v.shape[1]
    lane = jax.lax.broadcasted_iota(jnp.int32, v.shape, 1)
    feat = lane % feature_dim                      # block start is F-aligned
    is_x = feat == 0
    is_y = feat == 1

    # Pair every x lane with its y neighbour one lane to the right: a cyclic
    # rotation by TN-1 places v[j+1] at lane j.  Wrap-around only reaches
    # lanes whose result is overridden by the selects below.
    y_vals = pltpu.roll(v, n_lanes - 1, 1)

    dx = v - x0                                    # meaningful on x lanes
    dy = y_vals - y0                               # meaningful on x lanes
    new_x = dx * c + dy * s                        # rotate by -heading
    # new_y is computed where both dx/dy live (the x lanes) and rotated one
    # lane to the right so it lands on the y lanes.
    new_y = pltpu.roll(dy * c - dx * s, 1, 1)

    out = jnp.where(is_x, new_x, jnp.where(is_y, new_y, v))
    out_ref[...] = out.astype(out_ref.dtype)       # single lane-dense store


def _choose_tiles(B, N, F, itemsize):
    """Pick (TB, TN, grid_b, grid_n) for the flattened [B, N=C*L*F] layout."""
    # Lane tile must be a multiple of 128 (lane-dense, unmasked stores) and of
    # F (so lane % F is the feature index inside every block).
    lane_unit = (128 * F) // math.gcd(128, F)
    # Sublane (batch) granularity for the dtype: 8 f32 / 16 bf16 / 32 int8.
    sub_unit = max(8, 32 // itemsize)

    tb = B if B <= sub_unit else sub_unit

    # Lane tile: the whole row if it fits the per-block byte budget (a block
    # equal to the full dim is always legal, even when N is not 128-aligned),
    # otherwise the largest multiple of lane_unit that fits.
    budget_lanes = max(
        lane_unit,
        (_MAX_BLOCK_BYTES // (tb * itemsize)) // lane_unit * lane_unit)
    tn = N if N <= budget_lanes else budget_lanes

    # Whole rows fit -> spend the leftover budget on more batch rows per block
    # (this is what amortizes the ~0.35us per-step overhead for small C*L*F).
    if B > sub_unit and tn == N:
        rows = _MAX_BLOCK_BYTES // max(1, N * itemsize)
        tb = max(sub_unit,
                 min((B // sub_unit) * sub_unit, (rows // sub_unit) * sub_unit))

    grid_b = pl.cdiv(B, tb)
    grid_n = pl.cdiv(N, tn)

    # v7x has two TensorCores: if everything would be a single grid step but
    # carries enough data to matter, split the lane axis into two tiles.
    if (grid_b * grid_n == 1 and tn >= 2 * lane_unit
            and tb * tn * itemsize >= 512 * 1024):
        tn = pl.cdiv(tn // lane_unit, 2) * lane_unit
        grid_n = pl.cdiv(N, tn)

    return tb, tn, grid_b, grid_n


def _preprocess_impl(vector, agent_pose):
    B, C, L, F = vector.shape
    if F < 2:
        raise ValueError("vector must carry at least (x, y) feature channels")
    if agent_pose.shape != (B, 4):
        raise ValueError("agent_pose must be [B, 4] = (x, y, cos, sin)")

    N = C * L * F
    itemsize = jnp.dtype(vector.dtype).itemsize
    tb, tn, grid_b, grid_n = _choose_tiles(B, N, F, itemsize)

    vflat = vector.reshape(B, N)                   # contiguous -> free reshape
    pose = agent_pose.astype(jnp.float32)

    cost = pl.CostEstimate(
        flops=8 * B * C * L,
        transcendentals=0,
        bytes_accessed=2 * B * N * itemsize + B * 4 * 4,
    )

    out_flat = pl.pallas_call(
        functools.partial(_agent_frame_kernel, feature_dim=F),
        out_shape=jax.ShapeDtypeStruct((B, N), vector.dtype),
        grid=(grid_b, grid_n),
        in_specs=[
            pl.BlockSpec((tb, 4), lambda b, n: (b, 0)),     # pose (tiny)
            pl.BlockSpec((tb, tn), lambda b, n: (b, n)),    # vector block
        ],
        out_specs=pl.BlockSpec((tb, tn), lambda b, n: (b, n)),
        compiler_params=pltpu.CompilerParams(
            dimension_semantics=("parallel", "parallel"),
            vmem_limit_bytes=32 * 1024 * 1024,
        ),
        cost_estimate=cost,
    )(pose, vflat)

    return out_flat.reshape(B, C, L, F)            # free reshape back


preprocess = jax.jit(_preprocess_impl)


def preprocess_ref(vector, agent_pose):
    """Pure-JAX reference for correctness checking."""
    x0 = agent_pose[:, 0][:, None, None]
    y0 = agent_pose[:, 1][:, None, None]
    c = agent_pose[:, 2][:, None, None]
    s = agent_pose[:, 3][:, None, None]
    dx = vector[..., 0] - x0
    dy = vector[..., 1] - y0
    nx = dx * c + dy * s
    ny = dy * c - dx * s
    return jnp.concatenate([nx[..., None], ny[..., None], vector[..., 2:]],
                           axis=-1)


if __name__ == "__main__":
    B, C, L, F = 2, 4, 16, 8

    key = jax.random.PRNGKey(0)
    k_vec, k_xy, k_theta = jax.random.split(key, 3)

    vector = jax.random.normal(k_vec, (B, C, L, F), dtype=jnp.float32)
    xy = jax.random.normal(k_xy, (B, 2), dtype=jnp.float32) * 5.0
    theta = jax.random.uniform(k_theta, (B,), dtype=jnp.float32,
                               minval=-3.14, maxval=3.14)
    agent_pose = jnp.concatenate(
        [xy, jnp.cos(theta)[:, None], jnp.sin(theta)[:, None]], axis=-1)

    out = preprocess(vector, agent_pose)
    out = jax.block_until_ready(out)

    ref = preprocess_ref(vector, agent_pose)
    assert out.shape == (B, C, L, F), out.shape
    assert jnp.allclose(out, ref, atol=1e-5, rtol=1e-5), "mismatch vs reference"

    print("KERNEL_OK")
</pallas_src>

<mosaic_0001>
module attributes {stable_mosaic.version = 11 : i64} {
  func.func @_agent_frame_kernel(%arg0: i32, %arg1: i32, %arg2: memref<2x4xf32, #tpu.memory_space<vmem>>, %arg3: memref<2x512xf32, #tpu.memory_space<vmem>>, %arg4: memref<2x512xf32, #tpu.memory_space<vmem>>) attributes {dimension_semantics = [#tpu.dimension_semantics<parallel>, #tpu.dimension_semantics<parallel>], iteration_bounds = array<i64: 1, 1>, scalar_prefetch = 0 : i64, scratch_operands = 0 : i64, tpu.core_type = #tpu.core_type<tc>, window_params = [{transform_indices = @transform_0, window_bounds = array<i64: 2, 4>}, {transform_indices = @transform_1, window_bounds = array<i64: 2, 512>}, {transform_indices = @transform_2, window_bounds = array<i64: 2, 512>}]} {
    %c0 = arith.constant 0 : index
    %c0_0 = arith.constant 0 : index
    %0 = vector.load %arg3[%c0, %c0_0] : memref<2x512xf32, #tpu.memory_space<vmem>>, vector<2x512xf32>
    %c0_1 = arith.constant 0 : index
    %c0_2 = arith.constant 0 : index
    %1 = vector.load %arg2[%c0_1, %c0_2] : memref<2x4xf32, #tpu.memory_space<vmem>>, vector<2x1xf32>
    %c0_3 = arith.constant 0 : index
    %c1 = arith.constant 1 : index
    %2 = vector.load %arg2[%c0_3, %c1] : memref<2x4xf32, #tpu.memory_space<vmem>>, vector<2x1xf32>
    %c0_4 = arith.constant 0 : index
    %c2 = arith.constant 2 : index
    %3 = vector.load %arg2[%c0_4, %c2] : memref<2x4xf32, #tpu.memory_space<vmem>>, vector<2x1xf32>
    %c0_5 = arith.constant 0 : index
    %c3 = arith.constant 3 : index
    %4 = vector.load %arg2[%c0_5, %c3] : memref<2x4xf32, #tpu.memory_space<vmem>>, vector<2x1xf32>
    %5 = tpu.iota {dimensions = array<i32: 1>} : vector<2x512xi32>
    %c8_i32 = arith.constant 8 : i32
    %c0_i32 = arith.constant 0 : i32
    %6 = arith.cmpi eq, %c8_i32, %c0_i32 : i32
    %c1_i32 = arith.constant 1 : i32
    %7 = arith.select %6, %c1_i32, %c8_i32 : i32
    %8 = vector.broadcast %7 : i32 to vector<2x512xi32>
    %9 = arith.remsi %5, %8 : vector<2x512xi32>
    %c0_i32_6 = arith.constant 0 : i32
    %10 = vector.broadcast %c0_i32_6 : i32 to vector<2x512xi32>
    %11 = arith.cmpi ne, %9, %10 : vector<2x512xi32>
    %c0_i32_7 = arith.constant 0 : i32
    %12 = vector.broadcast %c0_i32_7 : i32 to vector<2x512xi32>
    %13 = arith.cmpi slt, %9, %12 : vector<2x512xi32>
    %c0_i32_8 = arith.constant 0 : i32
    %14 = arith.cmpi slt, %7, %c0_i32_8 : i32
    %15 = vector.broadcast %14 : i1 to vector<2x512xi1>
    %16 = vector.broadcast %15 : vector<2x512xi1> to vector<2x512xi1>
    %17 = arith.xori %13, %16 : vector<2x512xi1>
    %18 = arith.andi %17, %11 : vector<2x512xi1>
    %19 = vector.broadcast %7 : i32 to vector<2x512xi32>
    %20 = arith.addi %9, %19 : vector<2x512xi32>
    %21 = arith.select %18, %20, %9 : vector<2x512xi1>, vector<2x512xi32>
    %c0_i32_9 = arith.constant 0 : i32
    %22 = vector.broadcast %c0_i32_9 : i32 to vector<2x512xi32>
    %23 = arith.cmpi eq, %21, %22 : vector<2x512xi32>
    %c1_i32_10 = arith.constant 1 : i32
    %24 = vector.broadcast %c1_i32_10 : i32 to vector<2x512xi32>
    %25 = arith.cmpi eq, %21, %24 : vector<2x512xi32>
    %c511_i32 = arith.constant 511 : i32
    %26 = tpu.dynamic_rotate %0 by %c511_i32 dim 1 : vector<2x512xf32>, i32 -> vector<2x512xf32>
    %27 = vector.broadcast %1 : vector<2x1xf32> to vector<2x512xf32>
    %28 = arith.subf %0, %27 : vector<2x512xf32>
    %29 = vector.broadcast %2 : vector<2x1xf32> to vector<2x512xf32>
    %30 = arith.subf %26, %29 : vector<2x512xf32>
    %31 = vector.broadcast %3 : vector<2x1xf32> to vector<2x512xf32>
    %32 = arith.mulf %28, %31 : vector<2x512xf32>
    %33 = vector.broadcast %4 : vector<2x1xf32> to vector<2x512xf32>
    %34 = arith.mulf %30, %33 : vector<2x512xf32>
    %35 = arith.addf %32, %34 : vector<2x512xf32>
    %36 = vector.broadcast %3 : vector<2x1xf32> to vector<2x512xf32>
    %37 = arith.mulf %30, %36 : vector<2x512xf32>
    %38 = vector.broadcast %4 : vector<2x1xf32> to vector<2x512xf32>
    %39 = arith.mulf %28, %38 : vector<2x512xf32>
    %40 = arith.subf %37, %39 : vector<2x512xf32>
    %c1_i32_11 = arith.constant 1 : i32
    %41 = tpu.dynamic_rotate %40 by %c1_i32_11 dim 1 : vector<2x512xf32>, i32 -> vector<2x512xf32>
    %42 = arith.select %25, %41, %0 : vector<2x512xi1>, vector<2x512xf32>
    %43 = arith.select %23, %35, %42 : vector<2x512xi1>, vector<2x512xf32>
    %c0_12 = arith.constant 0 : index
    %c0_13 = arith.constant 0 : index
    %44 = vector.load %arg4[%c0_12, %c0_13] : memref<2x512xf32, #tpu.memory_space<vmem>>, vector<2x512xf32>
    tpu.vector_store %arg4[%c0_12, %c0_13], %43 {strides = array<i32>} : memref<2x512xf32, #tpu.memory_space<vmem>>, vector<2x512xf32>,
    return
  }
  func.func @transform_0(%arg0: i32, %arg1: i32) -> (i32, i32) {
    %c0_i32 = arith.constant 0 : i32
    %c0_i32_0 = arith.constant 0 : i32
    return %arg0, %c0_i32 : i32, i32
  }
  func.func @transform_1(%arg0: i32, %arg1: i32) -> (i32, i32) {
    %c0_i32 = arith.constant 0 : i32
    return %arg0, %arg1 : i32, i32
  }
  func.func @transform_2(%arg0: i32, %arg1: i32) -> (i32, i32) {
    %c0_i32 = arith.constant 0 : i32
    return %arg0, %arg1 : i32, i32
  }
}

</mosaic_0001>

<llo_original>
// kernel: _preprocess_impl.1
$region0: #{_preprocess_impl.1}
  #allocation0 [shape = 'u32[]', space=smem, size = 0x4, offset = 0x4, fixed_abs, tag = 'smem constant byte address 0x4 - core index']
  #allocation1 [shape = 'u32[72,128]{1,0:T(1,128)}', space=vmem, size = 0x9000, scoped, tag = 'internal scratch']
  %s0 = inlined_call_operand.vmem [shape: f32[2,4], index: 0, kind: input, shape index: {}]
  %s1 = inlined_call_operand.vmem [shape: f32[2,512], index: 1, kind: input, shape index: {}]
  %s2 = inlined_call_operand.vmem [shape: f32[2,512], index: 2, kind: output, shape index: {}]
  %s3 = sld [smem:[#allocation0]]
  $region18: #{_preprocess_impl.1} parent=0
    _
  %s5 = ssub.s32 1, %s3
  %s6 = scalar_select 0, %s5, %s3
  // Predicated region
  $region2: #{_preprocess_impl.1} parent=0 // pred_check
    _
  $region3: #{_preprocess_impl.1} parent=0 // pred_check_branch
    %8 = sbr.rel (0) target = $region5
  $region4: #{_preprocess_impl.1} parent=0 // pred_region
    _
  $region5: #{_preprocess_impl.1} parent=0 // pred_fallthru
    _
  // Predicated region
  $region6: #{_preprocess_impl.1} parent=0 // pred_check
    _
  $region7: #{_preprocess_impl.1} parent=0 // pred_check_branch
    %10 = sbr.rel (0) target = $region9
  $region8: #{_preprocess_impl.1} parent=0 // pred_region
    _
  $region9: #{_preprocess_impl.1} parent=0 // pred_fallthru
    _
  %v11 = vld [vmem:[%s1] sm:$0xff]
  %v12 = vld [vmem:[%s0] sm:$0x3]
  %v13 = vlaneseq
  %v14 = vand.u32 %v13, 127
  %v15 = vadd.s32 %v14, 128
  %v16 = vadd.s32 %v14, 256
  %v17 = vadd.s32 %v14, 384
  %vm18 = vcmp.lt.s32.totalorder %v14, 0
  %v19 = vsub.s32 0, %v14
  %v20 = vsel %vm18, %v19, %v14
  %v21 = vshrl.u32 %v20, 3
  %v22 = vand.u32 %v20, 7
  %v23 = vsub.s32 0, %v22
  %v24 = vsel %vm18, %v23, %v22
  %vm25 = vcmp.lt.s32.totalorder %v15, 0
  %v26 = vsub.s32 0, %v15
  %v27 = vsel %vm25, %v26, %v15
  %v28 = vshrl.u32 %v27, 3
  %v29 = vand.u32 %v27, 7
  %v30 = vsub.s32 0, %v29
  %v31 = vsel %vm25, %v30, %v29
  %vm32 = vcmp.lt.s32.totalorder %v16, 0
  %v33 = vsub.s32 0, %v16
  %v34 = vsel %vm32, %v33, %v16
  %v35 = vshrl.u32 %v34, 3
  %v36 = vand.u32 %v34, 7
  %v37 = vsub.s32 0, %v36
  %v38 = vsel %vm32, %v37, %v36
  %vm39 = vcmp.lt.s32.totalorder %v17, 0
  %v40 = vsub.s32 0, %v17
  %v41 = vsel %vm39, %v40, %v17
  %v42 = vshrl.u32 %v41, 3
  %v43 = vand.u32 %v41, 7
  %v44 = vsub.s32 0, %v43
  %v45 = vsel %vm39, %v44, %v43
  %vm46 = vcmp.ne.s32.totalorder %v24, 0
  %vm47 = vcmp.ne.s32.totalorder %v31, 0
  %vm48 = vcmp.ne.s32.totalorder %v38, 0
  %vm49 = vcmp.ne.s32.totalorder %v45, 0
  %vm50 = vcmp.lt.s32.totalorder %v24, 0
  %vm51 = vcmp.lt.s32.totalorder %v31, 0
  %vm52 = vcmp.lt.s32.totalorder %v38, 0
  %vm53 = vcmp.lt.s32.totalorder %v45, 0
  %vm54 = vmand %vm50, %vm46
  %vm55 = vmand %vm51, %vm47
  %vm56 = vmand %vm52, %vm48
  %vm57 = vmand %vm53, %vm49
  %v58 = vadd.s32 %v24, 8
  %v59 = vadd.s32 %v31, 8
  %v60 = vadd.s32 %v38, 8
  %v61 = vadd.s32 %v45, 8
  %v62 = vsel %vm54, %v58, %v24
  %v63 = vsel %vm55, %v59, %v31
  %v64 = vsel %vm56, %v60, %v38
  %v65 = vsel %vm57, %v61, %v45
  %vm66 = vcmp.eq.s32.totalorder %v62, 0
  %vm67 = vcmp.eq.s32.totalorder %v63, 0
  %vm68 = vcmp.eq.s32.totalorder %v64, 0
  %vm69 = vcmp.eq.s32.totalorder %v65, 0
  %vm70 = vcmp.eq.s32.totalorder %v62, 1
  %vm71 = vcmp.eq.s32.totalorder %v63, 1
  %vm72 = vcmp.eq.s32.totalorder %v64, 1
  %vm73 = vcmp.eq.s32.totalorder %v65, 1
  %75 = vst [vmem:[#allocation1] ss:$4 sm:$0xff] %v11
  %v76 = vld.sshfl [vmem:[#allocation1] sm:$0xff pattern:$0x73625140]
  %v77 = vld.sshfl [vmem:[#allocation1 + $0x8] sm:$0xff pattern:$0x73625140]
  %v78 = vld.sshfl [vmem:[#allocation1 + $0x10] sm:$0xff pattern:$0x73625140]
  %v79 = vld.sshfl [vmem:[#allocation1 + $0x18] sm:$0xff pattern:$0x73625140]
  %84 = vrot.lane.b32.xlu0 %v76, 127
  %v85 = vpop.permute.xlu0 %84
  %86 = vrot.lane.b32.xlu0 %v77, 127
  %v87 = vpop.permute.xlu0 %86
  %88 = vrot.lane.b32.xlu0 %v78, 127
  %v89 = vpop.permute.xlu0 %88
  %90 = vrot.lane.b32.xlu0 %v79, 127
  %v91 = vpop.permute.xlu0 %90
  %vm92 = vcmp.lt.s32.totalorder %v14, 127
  %v93 = vsel %vm92, %v89, %v91
  %v94 = vsel %vm92, %v87, %v89
  %v95 = vsel %vm92, %v85, %v87
  %v96 = vsel %vm92, %v91, %v85
  %98 = vset.pattern.permute.xlu0 0
  %99 = vperm.xlu0 %98, %v12
  %v100 = vpop.permute.xlu0 %99
  %v102 = vunpack.c.l.s4 269488144
  %v103 = vunpack.c.0.s8 %v102
  %v104 = vperm.slane %v100, %v103
  %v106 = vsub.f32 %v11, %v104
  %107 = vset.pattern.permute.xlu0 1
  %108 = vperm.xlu0 %107, %v12
  %v109 = vpop.permute.xlu0 %108
  %v111 = vsub.f32 %v95, %v109
  %v112 = vsub.f32 %v94, %v109
  %v113 = vsub.f32 %v93, %v109
  %v114 = vsub.f32 %v96, %v109
  %115 = vset.pattern.permute.xlu0 2
  %116 = vperm.xlu0 %115, %v12
  %v117 = vpop.permute.xlu0 %116
  %v120 = vunpack.c.l.s4 269488144
  %v121 = vunpack.c.0.s8 %v120
  %v122 = vperm.slane %v117, %v121
  %v124 = vmul.f32 %v106, %v122
  %125 = vset.pattern.permute.xlu0 3
  %126 = vperm.xlu0 %125, %v12
  %v127 = vpop.permute.xlu0 %126
  %v129 = vmul.f32 %v111, %v127
  %v130 = vmul.f32 %v112, %v127
  %v131 = vmul.f32 %v113, %v127
  %v132 = vmul.f32 %v114, %v127
  %v137 = vrot.slane %v130, 6
  %v138 = vrot.slane %v131, 4
  %v139 = vrot.slane %v132, 2
  %vm140 = vcmask 1041408
  %v141 = vsel %vm140, %v129, %v137
  %vm142 = vcmask 1045508
  %v143 = vsel %vm142, %v138, %v139
  %vm144 = vcmask 1043456
  %v145 = vsel %vm144, %v141, %v143
  %v147 = vadd.f32 %v124, %v145
  %v148 = vmul.f32 %v111, %v117
  %v149 = vmul.f32 %v112, %v117
  %v150 = vmul.f32 %v113, %v117
  %v151 = vmul.f32 %v114, %v117
  %v153 = vunpack.c.l.s4 269488144
  %v154 = vunpack.c.0.s8 %v153
  %v155 = vperm.slane %v127, %v154
  %v157 = vmul.f32 %v106, %v155
  %159 = vst [vmem:[#allocation1] ss:$4 sm:$0xff] %v157
  %v160 = vld.sshfl [vmem:[#allocation1] sm:$0xff pattern:$0x73625140]
  %v161 = vld.sshfl [vmem:[#allocation1 + $0x8] sm:$0xff pattern:$0x73625140]
  %v162 = vld.sshfl [vmem:[#allocation1 + $0x10] sm:$0xff pattern:$0x73625140]
  %v163 = vld.sshfl [vmem:[#allocation1 + $0x18] sm:$0xff pattern:$0x73625140]
  %v168 = vsub.f32 %v148, %v160
  %v169 = vsub.f32 %v149, %v161
  %v170 = vsub.f32 %v150, %v162
  %v171 = vsub.f32 %v151, %v163
  %172 = vrot.lane.b32.xlu0 %v168, 1
  %v173 = vpop.permute.xlu0 %172
  %174 = vrot.lane.b32.xlu0 %v169, 1
  %v175 = vpop.permute.xlu0 %174
  %176 = vrot.lane.b32.xlu0 %v170, 1
  %v177 = vpop.permute.xlu0 %176
  %178 = vrot.lane.b32.xlu0 %v171, 1
  %v179 = vpop.permute.xlu0 %178
  %vm180 = vcmp.lt.s32.totalorder %v14, 1
  %v181 = vsel %vm180, %v177, %v179
  %v182 = vsel %vm180, %v175, %v177
  %v183 = vsel %vm180, %v173, %v175
  %v184 = vsel %vm180, %v179, %v173
  %185 = vst [vmem:[#allocation1] ss:$4 sm:$0xff] %v11
  %v186 = vld.sshfl [vmem:[#allocation1] sm:$0xff pattern:$0x73625140]
  %v187 = vld.sshfl [vmem:[#allocation1 + $0x8] sm:$0xff pattern:$0x73625140]
  %v188 = vld.sshfl [vmem:[#allocation1 + $0x10] sm:$0xff pattern:$0x73625140]
  %v189 = vld.sshfl [vmem:[#allocation1 + $0x18] sm:$0xff pattern:$0x73625140]
  %v194 = vsel %vm70, %v184, %v186
  %v195 = vsel %vm71, %v183, %v187
  %v196 = vsel %vm72, %v182, %v188
  %v197 = vsel %vm73, %v181, %v189
  %199 = vst [vmem:[#allocation1] ss:$4 sm:$0xff] %v147
  %v200 = vld.sshfl [vmem:[#allocation1] sm:$0xff pattern:$0x73625140]
  %v201 = vld.sshfl [vmem:[#allocation1 + $0x8] sm:$0xff pattern:$0x73625140]
  %v202 = vld.sshfl [vmem:[#allocation1 + $0x10] sm:$0xff pattern:$0x73625140]
  %v203 = vld.sshfl [vmem:[#allocation1 + $0x18] sm:$0xff pattern:$0x73625140]
  %v208 = vsel %vm66, %v200, %v194
  %v209 = vsel %vm67, %v201, %v195
  %v210 = vsel %vm68, %v202, %v196
  %v211 = vsel %vm69, %v203, %v197
  %v216 = vrot.slane %v209, 6
  %v217 = vrot.slane %v210, 4
  %v218 = vrot.slane %v211, 2
  %v219 = vsel %vm140, %v208, %v216
  %v220 = vsel %vm142, %v217, %v218
  %v221 = vsel %vm144, %v219, %v220
  %223 = vst [vmem:[%s2] sm:$0xff] %v221
  // Predicated region
  $region10: #{_preprocess_impl.1} parent=0 // pred_check
    _
  $region11: #{_preprocess_impl.1} parent=0 // pred_check_branch
    %225 = sbr.rel (0) target = $region13
  $region12: #{_preprocess_impl.1} parent=0 // pred_region
    _
  $region13: #{_preprocess_impl.1} parent=0 // pred_fallthru
    _
  // Predicated region
  $region14: #{_preprocess_impl.1} parent=0 // pred_check
    _
  $region15: #{_preprocess_impl.1} parent=0 // pred_check_branch
    %227 = sbr.rel (0) target = $region17
  $region16: #{_preprocess_impl.1} parent=0 // pred_region
    _
  $region17: #{_preprocess_impl.1} parent=0 // pred_fallthru
    _

</llo_original>
